<compile_context>
chip_gen: v7x
topology: tpu7x:2x2x1
jax: 0.10.0
libtpu: 0.0.40
codegen_flags: <defaults>
</compile_context>

<pallas_src>
import jax
import jax.numpy as jnp
from jax.experimental import pallas as pl
from jax.experimental.pallas import tpu as pltpu

PATCH = 4
CHANNELS = 3
K_RAW = CHANNELS * PATCH * PATCH      # 48  (patch-vector length)
EMBED_DIM = 32
HEAD_HIDDEN = 64
HEAD_OUT = 64
LANE = 128                            # lane-dense padded width for K / D / H / O


# ----------------------------- Pallas kernels ------------------------------ #

def _embed(patches_ref, poolw_ref, w_ref, b_ref, mtok_ref):
    # patches: (N, P, 128), poolw: (N, P), w: (128, 128), b/mtok: (1, 128)
    # poolw[n, p] = (1 - mask[n, p]) / P_true[n] on real patches, 0 on pad
    # patches, so keep = sum_p poolw = 1 - mask_fraction (w.r.t. true P).
    pw = poolw_ref[...][:, :, None]                        # (N, P, 1)
    pooled = jnp.sum(patches_ref[...] * pw, axis=1)        # (N, 128)  VPU + XLU reduce
    keep = jnp.sum(poolw_ref[...], axis=1, keepdims=True)  # (N, 1)
    # Mask-token swap replaces the full projected+biased patch embedding
    # (same semantics as the original per-patch formulation).
    return (jnp.dot(pooled, w_ref[...], preferred_element_type=jnp.float32)
            + keep * b_ref[...] + (1.0 - keep) * mtok_ref[...])


def _backbone_kernel(patches_ref, poolw_ref, w_ref, b_ref, mtok_ref, feat_ref):
    feat_ref[...] = _embed(patches_ref, poolw_ref, w_ref, b_ref, mtok_ref)


def _fused_kernel(patches_ref, poolw_ref, w_ref, b_ref, mtok_ref,
                  w1_ref, b1_ref, w2_ref, b2_ref, feat_ref, out_ref):
    feat = _embed(patches_ref, poolw_ref, w_ref, b_ref, mtok_ref)      # (N, 128)
    feat_ref[...] = feat
    h = jax.nn.gelu(jnp.dot(feat, w1_ref[...], preferred_element_type=jnp.float32)
                    + b1_ref[...])
    out_ref[...] = (jnp.dot(h, w2_ref[...], preferred_element_type=jnp.float32)
                    + b2_ref[...])


# ------------------------------- host glue --------------------------------- #

def _extract_patches(x_nchw):
    """NCHW -> (N, P, C*p*p) non-overlapping patch extraction (reshape glue)."""
    N, C, H, W = x_nchw.shape
    p = PATCH
    hp, wp = H // p, W // p
    patches = x_nchw.reshape(N, C, hp, p, wp, p)
    patches = patches.transpose(0, 2, 4, 1, 3, 5).reshape(N, hp * wp, C * p * p)
    return patches


def _pad2(a, rows, cols):
    """Zero-pad a 2-D array to (rows, cols) — one-time lane-dense layout."""
    return jnp.pad(a, ((0, rows - a.shape[0]), (0, cols - a.shape[1])))


# ----------------------------- MultiCropWrapper ----------------------------- #

class MultiCropWrapper:
    """JAX/Pallas port of the PyTorch MultiCropWrapper forward semantics.

    The reference groups consecutive crops of equal resolution and runs the
    backbone once per group (torch.unique_consecutive + cumsum), then runs the
    head once on the concatenated features.  Because the fused kernel pads
    every crop's patch axis to the global maximum and renormalizes the pool
    weights by the true patch count, all resolution groups collapse into a
    single launch with identical numerics (up to fp summation order), and the
    head is fused into the same launch.
    """

    def __init__(self, backbone_params, head_params=None):
        # backbone.fc / backbone.head are Identity() in the reference; the
        # synthetic patch-embed backbone already returns raw features.
        bp = backbone_params
        self._w = _pad2(bp["patch_w"], LANE, LANE)
        self._b = _pad2(bp["patch_b"], 1, LANE)
        self._mtok = _pad2(bp["mask_token"], 1, LANE)
        self._has_head = head_params is not None
        if self._has_head:
            hp = head_params
            self._w1 = _pad2(hp["w1"], LANE, LANE)
            self._b1 = _pad2(hp["b1"], 1, LANE)
            self._w2 = _pad2(hp["w2"], LANE, LANE)
            self._b2 = _pad2(hp["b2"], 1, LANE)

    def __call__(self, x, mask=None, return_backbone_feat=False, **kwargs):
        # kwargs (extra backbone args) are not used by the synthetic backbone.
        if not isinstance(x, (list, tuple)):
            x = [x]
            mask = [mask] if mask is not None else None

        # The torch resolution-grouping is pure shape bookkeeping; list order
        # is preserved by concatenating all crops directly, and the fused
        # padded launch handles every resolution group.
        p_list = [(int(inp.shape[-2]) // PATCH) * (int(inp.shape[-1]) // PATCH)
                  for inp in x]
        p_max = max(p_list)

        patches_all, poolw_all = [], []
        for idx, inp in enumerate(x):
            patches = _extract_patches(inp.astype(jnp.float32))   # (Ni, Pi, 48)
            n_i, p_i = patches.shape[0], patches.shape[1]
            patches = jnp.pad(
                patches, ((0, 0), (0, p_max - p_i), (0, LANE - K_RAW)))
            if mask is None or mask[idx] is None:
                w_i = jnp.full((n_i, p_i), 1.0 / p_i, jnp.float32)
            else:
                w_i = (1.0 - mask[idx].astype(jnp.float32)) / p_i
            poolw = jnp.pad(w_i, ((0, 0), (0, p_max - p_i)))      # pad patches: 0
            patches_all.append(patches)
            poolw_all.append(poolw)

        patches_all = jnp.concatenate(patches_all, axis=0)        # (N, Pmax, 128)
        poolw_all = jnp.concatenate(poolw_all, axis=0)            # (N, Pmax)
        n_total = int(patches_all.shape[0])

        vmem = pl.BlockSpec(memory_space=pltpu.MemorySpace.VMEM)
        flops = 2 * n_total * p_max * LANE + 2 * n_total * LANE * LANE
        transcendentals = 0
        if self._has_head:
            flops += 2 * 2 * n_total * LANE * LANE
            transcendentals = n_total * LANE
            operands = (patches_all, poolw_all, self._w, self._b, self._mtok,
                        self._w1, self._b1, self._w2, self._b2)
            bytes_accessed = (sum(int(o.size) * 4 for o in operands)
                              + 2 * n_total * LANE * 4)
            feat_pad, out_pad = pl.pallas_call(
                _fused_kernel,
                out_shape=(jax.ShapeDtypeStruct((n_total, LANE), jnp.float32),
                           jax.ShapeDtypeStruct((n_total, LANE), jnp.float32)),
                in_specs=[vmem] * 9,
                out_specs=(vmem, vmem),
                cost_estimate=pl.CostEstimate(flops=flops,
                                              transcendentals=transcendentals,
                                              bytes_accessed=bytes_accessed),
            )(*operands)
            output = feat_pad[:, :EMBED_DIM]
            output_ = out_pad[:, :HEAD_OUT]
        else:
            operands = (patches_all, poolw_all, self._w, self._b, self._mtok)
            bytes_accessed = (sum(int(o.size) * 4 for o in operands)
                              + n_total * LANE * 4)
            feat_pad = pl.pallas_call(
                _backbone_kernel,
                out_shape=jax.ShapeDtypeStruct((n_total, LANE), jnp.float32),
                in_specs=[vmem] * 5,
                out_specs=vmem,
                cost_estimate=pl.CostEstimate(flops=flops,
                                              transcendentals=transcendentals,
                                              bytes_accessed=bytes_accessed),
            )(*operands)
            output = feat_pad[:, :EMBED_DIM]
            output_ = output                        # head = Identity()
        if return_backbone_feat:
            return output, output_
        return output_


# --------------------------------- params ----------------------------------- #

def init_params(key):
    k = jax.random.split(key, 4)
    backbone = {
        "patch_w": jax.random.normal(k[0], (K_RAW, EMBED_DIM), jnp.float32) * 0.02,
        "patch_b": jnp.zeros((1, EMBED_DIM), jnp.float32),
        "mask_token": jax.random.normal(k[1], (1, EMBED_DIM), jnp.float32) * 0.02,
    }
    head = {
        "w1": jax.random.normal(k[2], (EMBED_DIM, HEAD_HIDDEN), jnp.float32) * 0.02,
        "b1": jnp.zeros((1, HEAD_HIDDEN), jnp.float32),
        "w2": jax.random.normal(k[3], (HEAD_HIDDEN, HEAD_OUT), jnp.float32) * 0.02,
        "b2": jnp.zeros((1, HEAD_OUT), jnp.float32),
    }
    return backbone, head


def _reference_forward(bp, hp, crops, masks):
    """Plain-JAX reference of the original formulation (per-patch embed ->
    mask-token swap -> mean pool -> 2-layer MLP head)."""
    feats = []
    for xc, mc in zip(crops, masks):
        patches = _extract_patches(xc.astype(jnp.float32))        # (N, P, 48)
        emb = patches @ bp["patch_w"] + bp["patch_b"]             # (N, P, 32)
        m = mc.astype(jnp.float32)[:, :, None]
        emb = emb * (1.0 - m) + bp["mask_token"][None, :, :] * m
        feats.append(jnp.mean(emb, axis=1))
    feat = jnp.concatenate(feats, axis=0)
    h = jax.nn.gelu(feat @ hp["w1"] + hp["b1"])
    out = h @ hp["w2"] + hp["b2"]
    return feat, out


# ----------------------------------- main ------------------------------------ #

if __name__ == "__main__":
    root = jax.random.PRNGKey(0)
    k_param, k_data = jax.random.split(root)
    backbone_params, head_params = init_params(k_param)

    wrapper = MultiCropWrapper(backbone_params, head_params)

    # 2 "global" crops at 16x16 and 2 "local" crops at 8x8, batch=2, NCHW.
    dk = jax.random.split(k_data, 8)
    crops = [
        jax.random.normal(dk[0], (2, CHANNELS, 16, 16), jnp.float32),
        jax.random.normal(dk[1], (2, CHANNELS, 16, 16), jnp.float32),
        jax.random.normal(dk[2], (2, CHANNELS, 8, 8), jnp.float32),
        jax.random.normal(dk[3], (2, CHANNELS, 8, 8), jnp.float32),
    ]
    # One boolean patch-mask per crop (P = (H/4)*(W/4)).
    masks = [
        jax.random.bernoulli(dk[4], 0.3, (2, 16)),
        jax.random.bernoulli(dk[5], 0.3, (2, 16)),
        jax.random.bernoulli(dk[6], 0.3, (2, 4)),
        jax.random.bernoulli(dk[7], 0.3, (2, 4)),
    ]

    feats, out = wrapper(crops, mask=masks, return_backbone_feat=True)
    feats = jax.block_until_ready(feats)
    out = jax.block_until_ready(out)

    assert feats.shape == (8, EMBED_DIM), feats.shape
    assert out.shape == (8, HEAD_OUT), out.shape
    assert bool(jnp.all(jnp.isfinite(out)))

    # Numerical check: the pool-before-matmul rewrite only reorders fp
    # summation, so the fused kernel must match the original formulation.
    ref_feat, ref_out = _reference_forward(backbone_params, head_params, crops, masks)
    assert bool(jnp.allclose(feats, ref_feat, atol=5e-3)), \
        float(jnp.max(jnp.abs(feats - ref_feat)))
    assert bool(jnp.allclose(out, ref_out, atol=5e-3)), \
        float(jnp.max(jnp.abs(out - ref_out)))

    # TODO(synk): the real iBOT backbone (ViT) and DINOHead are injected
    # modules; a synthetic patch-embed backbone + 2-layer MLP head stand in.
    print("KERNEL_OK")
</pallas_src>

<mosaic_0001>
module attributes {stable_mosaic.version = 11 : i64} {
  func.func @_fused_kernel(%arg0: memref<8x16x128xf32, #tpu.memory_space<vmem>>, %arg1: memref<8x16xf32, #tpu.memory_space<vmem>>, %arg2: memref<128x128xf32, #tpu.memory_space<vmem>>, %arg3: memref<1x128xf32, #tpu.memory_space<vmem>>, %arg4: memref<1x128xf32, #tpu.memory_space<vmem>>, %arg5: memref<128x128xf32, #tpu.memory_space<vmem>>, %arg6: memref<1x128xf32, #tpu.memory_space<vmem>>, %arg7: memref<128x128xf32, #tpu.memory_space<vmem>>, %arg8: memref<1x128xf32, #tpu.memory_space<vmem>>, %arg9: memref<8x128xf32, #tpu.memory_space<vmem>>, %arg10: memref<8x128xf32, #tpu.memory_space<vmem>>) attributes {dimension_semantics = [], scalar_prefetch = 0 : i64, scratch_operands = 0 : i64, tpu.core_type = #tpu.core_type<tc>} {
    %c0 = arith.constant 0 : index
    %c0_0 = arith.constant 0 : index
    %0 = vector.load %arg1[%c0, %c0_0] : memref<8x16xf32, #tpu.memory_space<vmem>>, vector<8x16xf32>
    %1 = vector.shape_cast %0 : vector<8x16xf32> to vector<8x16x1xf32>
    %c0_1 = arith.constant 0 : index
    %c0_2 = arith.constant 0 : index
    %c0_3 = arith.constant 0 : index
    %2 = vector.load %arg0[%c0_1, %c0_2, %c0_3] : memref<8x16x128xf32, #tpu.memory_space<vmem>>, vector<8x16x128xf32>
    %3 = vector.broadcast %1 : vector<8x16x1xf32> to vector<8x16x128xf32>
    %4 = arith.mulf %2, %3 : vector<8x16x128xf32>
    %cst = arith.constant dense<0.000000e+00> : vector<8x128xf32>
    %5 = vector.multi_reduction <add>, %4, %cst [1] : vector<8x16x128xf32> to vector<8x128xf32>
    %c0_4 = arith.constant 0 : index
    %c0_5 = arith.constant 0 : index
    %6 = vector.load %arg1[%c0_4, %c0_5] : memref<8x16xf32, #tpu.memory_space<vmem>>, vector<8x16xf32>
    %cst_6 = arith.constant dense<0.000000e+00> : vector<8xf32>
    %7 = vector.multi_reduction <add>, %6, %cst_6 [1] : vector<8x16xf32> to vector<8xf32>
    %8 = vector.shape_cast %7 : vector<8xf32> to vector<8x1xf32>
    %c0_7 = arith.constant 0 : index
    %c0_8 = arith.constant 0 : index
    %9 = vector.load %arg2[%c0_7, %c0_8] : memref<128x128xf32, #tpu.memory_space<vmem>>, vector<128x128xf32>
    %cst_9 = arith.constant dense<0.000000e+00> : vector<8x128xf32>
    %10 = tpu.matmul %5, %9, %cst_9 {dimension_numbers = #tpu.dot_dimension_numbers<[1], [0], [0], [1], [0, 0, 1, 1], [], []>} : vector<8x128xf32>, vector<128x128xf32>, vector<8x128xf32> -> vector<8x128xf32>
    %c0_10 = arith.constant 0 : index
    %c0_11 = arith.constant 0 : index
    %11 = vector.load %arg3[%c0_10, %c0_11] : memref<1x128xf32, #tpu.memory_space<vmem>>, vector<1x128xf32>
    %12 = vector.broadcast %8 : vector<8x1xf32> to vector<8x128xf32>
    %13 = vector.broadcast %11 : vector<1x128xf32> to vector<8x128xf32>
    %14 = arith.mulf %12, %13 : vector<8x128xf32>
    %15 = arith.addf %10, %14 : vector<8x128xf32>
    %cst_12 = arith.constant 1.000000e+00 : f32
    %16 = vector.broadcast %cst_12 : f32 to vector<8x1xf32>
    %17 = arith.subf %16, %8 : vector<8x1xf32>
    %c0_13 = arith.constant 0 : index
    %c0_14 = arith.constant 0 : index
    %18 = vector.load %arg4[%c0_13, %c0_14] : memref<1x128xf32, #tpu.memory_space<vmem>>, vector<1x128xf32>
    %19 = vector.broadcast %17 : vector<8x1xf32> to vector<8x128xf32>
    %20 = vector.broadcast %18 : vector<1x128xf32> to vector<8x128xf32>
    %21 = arith.mulf %19, %20 : vector<8x128xf32>
    %22 = arith.addf %15, %21 : vector<8x128xf32>
    %c0_15 = arith.constant 0 : index
    %c0_16 = arith.constant 0 : index
    %23 = vector.load %arg9[%c0_15, %c0_16] : memref<8x128xf32, #tpu.memory_space<vmem>>, vector<8x128xf32>
    tpu.vector_store %arg9[%c0_15, %c0_16], %22 {strides = array<i32>} : memref<8x128xf32, #tpu.memory_space<vmem>>, vector<8x128xf32>,
    %c0_17 = arith.constant 0 : index
    %c0_18 = arith.constant 0 : index
    %24 = vector.load %arg5[%c0_17, %c0_18] : memref<128x128xf32, #tpu.memory_space<vmem>>, vector<128x128xf32>
    %cst_19 = arith.constant dense<0.000000e+00> : vector<8x128xf32>
    %25 = tpu.matmul %22, %24, %cst_19 {dimension_numbers = #tpu.dot_dimension_numbers<[1], [0], [0], [1], [0, 0, 1, 1], [], []>} : vector<8x128xf32>, vector<128x128xf32>, vector<8x128xf32> -> vector<8x128xf32>
    %c0_20 = arith.constant 0 : index
    %c0_21 = arith.constant 0 : index
    %26 = vector.load %arg6[%c0_20, %c0_21] : memref<1x128xf32, #tpu.memory_space<vmem>>, vector<1x128xf32>
    %27 = vector.broadcast %26 : vector<1x128xf32> to vector<8x128xf32>
    %28 = arith.addf %25, %27 : vector<8x128xf32>
    %29 = arith.mulf %28, %28 : vector<8x128xf32>
    %30 = arith.mulf %28, %29 : vector<8x128xf32>
    %cst_22 = arith.constant 4.471500e-02 : f32
    %31 = vector.broadcast %cst_22 : f32 to vector<8x128xf32>
    %32 = arith.mulf %31, %30 : vector<8x128xf32>
    %33 = arith.addf %28, %32 : vector<8x128xf32>
    %cst_23 = arith.constant 0.797884583 : f32
    %34 = vector.broadcast %cst_23 : f32 to vector<8x128xf32>
    %35 = arith.mulf %34, %33 : vector<8x128xf32>
    %36 = math.tanh %35 : vector<8x128xf32>
    %cst_24 = arith.constant 1.000000e+00 : f32
    %37 = vector.broadcast %cst_24 : f32 to vector<8x128xf32>
    %38 = arith.addf %37, %36 : vector<8x128xf32>
    %cst_25 = arith.constant 5.000000e-01 : f32
    %39 = vector.broadcast %cst_25 : f32 to vector<8x128xf32>
    %40 = arith.mulf %39, %38 : vector<8x128xf32>
    %41 = arith.mulf %28, %40 : vector<8x128xf32>
    %c0_26 = arith.constant 0 : index
    %c0_27 = arith.constant 0 : index
    %42 = vector.load %arg7[%c0_26, %c0_27] : memref<128x128xf32, #tpu.memory_space<vmem>>, vector<128x128xf32>
    %cst_28 = arith.constant dense<0.000000e+00> : vector<8x128xf32>
    %43 = tpu.matmul %41, %42, %cst_28 {dimension_numbers = #tpu.dot_dimension_numbers<[1], [0], [0], [1], [0, 0, 1, 1], [], []>} : vector<8x128xf32>, vector<128x128xf32>, vector<8x128xf32> -> vector<8x128xf32>
    %c0_29 = arith.constant 0 : index
    %c0_30 = arith.constant 0 : index
    %44 = vector.load %arg8[%c0_29, %c0_30] : memref<1x128xf32, #tpu.memory_space<vmem>>, vector<1x128xf32>
    %45 = vector.broadcast %44 : vector<1x128xf32> to vector<8x128xf32>
    %46 = arith.addf %43, %45 : vector<8x128xf32>
    %c0_31 = arith.constant 0 : index
    %c0_32 = arith.constant 0 : index
    %47 = vector.load %arg10[%c0_31, %c0_32] : memref<8x128xf32, #tpu.memory_space<vmem>>, vector<8x128xf32>
    tpu.vector_store %arg10[%c0_31, %c0_32], %46 {strides = array<i32>} : memref<8x128xf32, #tpu.memory_space<vmem>>, vector<8x128xf32>,
    return
  }
}

</mosaic_0001>

<llo_original>
// kernel: tpu_custom_call.1
$region0: #{tpu_custom_call.1}
  #allocation0 [shape = 'u32[]', space=smem, size = 0x4, offset = 0x4, fixed_abs, tag = 'smem constant byte address 0x4 - core index']
  #allocation1 [shape = 'u32[144,128]{1,0:T(1,128)}', space=vmem, size = 0x12000, scoped, tag = 'internal scratch']
  %s0 = inlined_call_operand.hbm [shape: f32[8,16,128], index: 0, kind: input, shape index: {}]
  %s1 = inlined_call_operand.hbm [shape: f32[8,16], index: 1, kind: input, shape index: {}]
  %s2 = inlined_call_operand.hbm [shape: f32[128,128], index: 2, kind: input, shape index: {}]
  %s3 = inlined_call_operand.vmem [shape: f32[1,128], index: 3, kind: input, shape index: {}]
  %s4 = inlined_call_operand.vmem [shape: f32[1,128], index: 4, kind: input, shape index: {}]
  %s5 = inlined_call_operand.hbm [shape: f32[128,128], index: 5, kind: input, shape index: {}]
  %s6 = inlined_call_operand.vmem [shape: f32[1,128], index: 6, kind: input, shape index: {}]
  %s7 = inlined_call_operand.hbm [shape: f32[128,128], index: 7, kind: input, shape index: {}]
  %s8 = inlined_call_operand.vmem [shape: f32[1,128], index: 8, kind: input, shape index: {}]
  %s9 = inlined_call_operand.hbm [shape: f32[8,128], index: 9, kind: output, shape index: {0}]
  %s10 = inlined_call_operand.hbm [shape: f32[8,128], index: 10, kind: output, shape index: {1}]
  %11 = xla_tuple %s9, %s10
  %s12 = sld [smem:[#allocation0]]
  $region74: #{tpu_custom_call.1} parent=0
    _
  %s14 = ssub.s32 1, %s12
  %s15 = scalar_select 0, %s14, %s12
  $region1: #{tpu_custom_call.1} parent=0
    #allocation2 [shape = 'u8[65536]{0}', space=vmem, size = 0x10000, scoped, tag = 'input window, operand 0, single buffered']
    #allocation3 [shape = 's32[1]{0}', space=sflag, size = 0x4, scoped, tag = 'scoped memory for tpu_custom_call.1']
    #allocation4 [shape = 's32[1]{0}', space=sflag, size = 0x4, scoped, tag = 'scoped memory for tpu_custom_call.1']
    #allocation5 [shape = 'u8[4096]{0}', space=vmem, size = 0x1000, scoped, tag = 'input window, operand 1, single buffered']
    #allocation6 [shape = 's32[1]{0}', space=sflag, size = 0x4, scoped, tag = 'scoped memory for tpu_custom_call.1']
    #allocation7 [shape = 'u8[65536]{0}', space=vmem, size = 0x10000, scoped, tag = 'input window, operand 2, single buffered']
    #allocation8 [shape = 'u8[65536]{0}', space=vmem, size = 0x10000, scoped, tag = 'input window, operand 5, single buffered']
    #allocation9 [shape = 's32[1]{0}', space=sflag, size = 0x4, scoped, tag = 'scoped memory for tpu_custom_call.1']
    #allocation10 [shape = 'u8[65536]{0}', space=vmem, size = 0x10000, scoped, tag = 'input window, operand 7, single buffered']
    #allocation11 [shape = 'u8[4096]{0}', space=vmem, size = 0x1000, scoped, tag = 'output window, operand 0, single buffered']
    #allocation12 [shape = 'u8[4096]{0}', space=vmem, size = 0x1000, scoped, tag = 'output window, operand 1, single buffered']
    #allocation13 [shape = 's32[1]{0}', space=sflag, size = 0x4, scoped, tag = 'scoped memory for tpu_custom_call.1']
    %16 = vsyncpa [#allocation3], 0
    %17 = vsyncpa [#allocation6], 0
    %18 = vsyncpa [#allocation9], 0
    %19 = vsyncpa [#allocation4], 0
    %20 = vsyncpa [#allocation13], 0
    // Predicated region
    $region2: #{tpu_custom_call.1} parent=1 // pred_check
      _
    $region3: #{tpu_custom_call.1} parent=1 // pred_check_branch
      %22 = sbr.rel (0) target = $region5
    $region4: #{tpu_custom_call.1} parent=1 // pred_region
      %s24 = ssub.s32 2048, 2048
      %25 = vsyncadd [#allocation3], %s24
      %s26 = sshll.u32 [#allocation2], 4
      %s27 = int_to_ptr.vmem [resolvable:$true] %s26
      %32 = dma.hbm_to_vmem [thread:$0]  %s0, 2048, %s27, [#allocation3], 128, 128, 8
    $region5: #{tpu_custom_call.1} parent=1 // pred_fallthru
      _
    // Predicated region
    $region6: #{tpu_custom_call.1} parent=1 // pred_check
      _
    $region7: #{tpu_custom_call.1} parent=1 // pred_check_branch
      %34 = sbr.rel (0) target = $region9
    $region8: #{tpu_custom_call.1} parent=1 // pred_region
      %s36 = ssub.s32 128, 128
      %37 = vsyncadd [#allocation6], %s36
      %s39 = sshll.u32 [#allocation5], 4
      %s40 = int_to_ptr.vmem [resolvable:$true] %s39
      %42 = dma.hbm_to_vmem [thread:$0]  %s1, 128, %s40, [#allocation6]
    $region9: #{tpu_custom_call.1} parent=1 // pred_fallthru
      _
    // Predicated region
    $region10: #{tpu_custom_call.1} parent=1 // pred_check
      _
    $region11: #{tpu_custom_call.1} parent=1 // pred_check_branch
      %44 = sbr.rel (0) target = $region13
    $region12: #{tpu_custom_call.1} parent=1 // pred_region
      %s46 = ssub.s32 2048, 2048
      %47 = vsyncadd [#allocation6], %s46
      %s48 = sshll.u32 [#allocation7], 4
      %s49 = int_to_ptr.vmem [resolvable:$true] %s48
      %54 = dma.hbm_to_vmem [thread:$0]  %s2, 2048, %s49, [#allocation6], 128, 128, 8
    $region13: #{tpu_custom_call.1} parent=1 // pred_fallthru
      _
    // Predicated region
    $region14: #{tpu_custom_call.1} parent=1 // pred_check
      _
    $region15: #{tpu_custom_call.1} parent=1 // pred_check_branch
      %56 = sbr.rel (0) target = $region17
    $region16: #{tpu_custom_call.1} parent=1 // pred_region
      _
    $region17: #{tpu_custom_call.1} parent=1 // pred_fallthru
      _
    // Predicated region
    $region18: #{tpu_custom_call.1} parent=1 // pred_check
      _
    $region19: #{tpu_custom_call.1} parent=1 // pred_check_branch
      %58 = sbr.rel (0) target = $region21
    $region20: #{tpu_custom_call.1} parent=1 // pred_region
      _
    $region21: #{tpu_custom_call.1} parent=1 // pred_fallthru
      _
    // Predicated region
    $region22: #{tpu_custom_call.1} parent=1 // pred_check
      _
    $region23: #{tpu_custom_call.1} parent=1 // pred_check_branch
      %60 = sbr.rel (0) target = $region25
    $region24: #{tpu_custom_call.1} parent=1 // pred_region
      %s62 = ssub.s32 2048, 2048
      %63 = vsyncadd [#allocation9], %s62
      %s64 = sshll.u32 [#allocation8], 4
      %s65 = int_to_ptr.vmem [resolvable:$true] %s64
      %70 = dma.hbm_to_vmem [thread:$0]  %s5, 2048, %s65, [#allocation9], 128, 128, 8
    $region25: #{tpu_custom_call.1} parent=1 // pred_fallthru
      _
    // Predicated region
    $region26: #{tpu_custom_call.1} parent=1 // pred_check
      _
    $region27: #{tpu_custom_call.1} parent=1 // pred_check_branch
      %72 = sbr.rel (0) target = $region29
    $region28: #{tpu_custom_call.1} parent=1 // pred_region
      _
    $region29: #{tpu_custom_call.1} parent=1 // pred_fallthru
      _
    // Predicated region
    $region30: #{tpu_custom_call.1} parent=1 // pred_check
      _
    $region31: #{tpu_custom_call.1} parent=1 // pred_check_branch
      %74 = sbr.rel (0) target = $region33
    $region32: #{tpu_custom_call.1} parent=1 // pred_region
      %s76 = ssub.s32 2048, 2048
      %77 = vsyncadd [#allocation9], %s76
      %s78 = sshll.u32 [#allocation10], 4
      %s79 = int_to_ptr.vmem [resolvable:$true] %s78
      %84 = dma.hbm_to_vmem [thread:$0]  %s7, 2048, %s79, [#allocation9], 128, 128, 8
    $region33: #{tpu_custom_call.1} parent=1 // pred_fallthru
      _
    // Predicated region
    $region34: #{tpu_custom_call.1} parent=1 // pred_check
      _
    $region35: #{tpu_custom_call.1} parent=1 // pred_check_branch
      %86 = sbr.rel (0) target = $region37
    $region36: #{tpu_custom_call.1} parent=1 // pred_region
      _
    $region37: #{tpu_custom_call.1} parent=1 // pred_fallthru
      _
    // Predicated region
    $region38: #{tpu_custom_call.1} parent=1 // pred_check
      _
    $region39: #{tpu_custom_call.1} parent=1 // pred_check_branch
      %88 = sbr.rel (0) target = $region41
    $region40: #{tpu_custom_call.1} parent=1 // pred_region
      %89 = dma.done [#allocation3], 2048
    $region41: #{tpu_custom_call.1} parent=1 // pred_fallthru
      _
    // Predicated region
    $region42: #{tpu_custom_call.1} parent=1 // pred_check
      _
    $region43: #{tpu_custom_call.1} parent=1 // pred_check_branch
      %91 = sbr.rel (0) target = $region45
    $region44: #{tpu_custom_call.1} parent=1 // pred_region
      %92 = dma.done [#allocation6], 128
    $region45: #{tpu_custom_call.1} parent=1 // pred_fallthru
      _
    // Predicated region
    $region46: #{tpu_custom_call.1} parent=1 // pred_check
      _
    $region47: #{tpu_custom_call.1} parent=1 // pred_check_branch
      %94 = sbr.rel (0) target = $region49
    $region48: #{tpu_custom_call.1} parent=1 // pred_region
      %95 = dma.done [#allocation6], 2048
    $region49: #{tpu_custom_call.1} parent=1 // pred_fallthru
      _
    // Predicated region
    $region50: #{tpu_custom_call.1} parent=1 // pred_check
      _
    $region51: #{tpu_custom_call.1} parent=1 // pred_check_branch
      %97 = sbr.rel (0) target = $region53
    $region52: #{tpu_custom_call.1} parent=1 // pred_region
      %98 = dma.done [#allocation9], 2048
    $region53: #{tpu_custom_call.1} parent=1 // pred_fallthru
      _
    // Predicated region
    $region54: #{tpu_custom_call.1} parent=1 // pred_check
      _
    $region55: #{tpu_custom_call.1} parent=1 // pred_check_branch
      %100 = sbr.rel (0) target = $region57
    $region56: #{tpu_custom_call.1} parent=1 // pred_region
      %101 = dma.done [#allocation9], 2048
    $region57: #{tpu_custom_call.1} parent=1 // pred_fallthru
      _
    %v102 = vld [vmem:[#allocation5] sm:$0xff]
    %v103 = vlaneseq
    %v104 = vshrl.u32 %v103, 7
    %v105 = vsub.s32 0, %v104
    %v106 = vrot.slane %v102, %v105
    %108 = vbcast.lane.b32.xlu0 %v106, 256
    %v109 = vpop.permute.xlu0 %108
    %s111 = sor.u32 256, 8
    %112 = vbcast.lane.b32.xlu0 %v106, %s111
    %v113 = vpop.permute.xlu0 %112
    %v114 = vlaneseq
    %v115 = vshrl.u32 %v114, 7
    %v116 = vsub.s32 1, %v115
    %v117 = vrot.slane %v102, %v116
    %119 = vbcast.lane.b32.xlu0 %v117, 256
    %v120 = vpop.permute.xlu0 %119
    %s122 = sor.u32 256, 8
    %123 = vbcast.lane.b32.xlu0 %v117, %s122
    %v124 = vpop.permute.xlu0 %123
    %v125 = vlaneseq
    %v126 = vshrl.u32 %v125, 7
    %v127 = vsub.s32 2, %v126
    %v128 = vrot.slane %v102, %v127
    %130 = vbcast.lane.b32.xlu0 %v128, 256
    %v131 = vpop.permute.xlu0 %130
    %s133 = sor.u32 256, 8
    %134 = vbcast.lane.b32.xlu0 %v128, %s133
    %v135 = vpop.permute.xlu0 %134
    %v136 = vlaneseq
    %v137 = vshrl.u32 %v136, 7
    %v138 = vsub.s32 3, %v137
    %v139 = vrot.slane %v102, %v138
    %141 = vbcast.lane.b32.xlu0 %v139, 256
    %v142 = vpop.permute.xlu0 %141
    %s144 = sor.u32 256, 8
    %145 = vbcast.lane.b32.xlu0 %v139, %s144
    %v146 = vpop.permute.xlu0 %145
    %v147 = vlaneseq
    %v148 = vshrl.u32 %v147, 7
    %v149 = vsub.s32 4, %v148
    %v150 = vrot.slane %v102, %v149
    %152 = vbcast.lane.b32.xlu0 %v150, 256
    %v153 = vpop.permute.xlu0 %152
    %s155 = sor.u32 256, 8
    %156 = vbcast.lane.b32.xlu0 %v150, %s155
    %v157 = vpop.permute.xlu0 %156
    %v158 = vlaneseq
    %v159 = vshrl.u32 %v158, 7
    %v160 = vsub.s32 5, %v159
    %v161 = vrot.slane %v102, %v160
    %163 = vbcast.lane.b32.xlu0 %v161, 256
    %v164 = vpop.permute.xlu0 %163
    %s166 = sor.u32 256, 8
    %167 = vbcast.lane.b32.xlu0 %v161, %s166
    %v168 = vpop.permute.xlu0 %167
    %v169 = vlaneseq
    %v170 = vshrl.u32 %v169, 7
    %v171 = vsub.s32 6, %v170
    %v172 = vrot.slane %v102, %v171
    %174 = vbcast.lane.b32.xlu0 %v172, 256
    %v175 = vpop.permute.xlu0 %174
    %s177 = sor.u32 256, 8
    %178 = vbcast.lane.b32.xlu0 %v172, %s177
    %v179 = vpop.permute.xlu0 %178
    %v180 = vlaneseq
    %v181 = vshrl.u32 %v180, 7
    %v182 = vsub.s32 7, %v181
    %v183 = vrot.slane %v102, %v182
    %185 = vbcast.lane.b32.xlu0 %v183, 256
    %v186 = vpop.permute.xlu0 %185
    %s188 = sor.u32 256, 8
    %189 = vbcast.lane.b32.xlu0 %v183, %s188
    %v190 = vpop.permute.xlu0 %189
    %v191 = vld [vmem:[#allocation2] sm:$0xff]
    %v192 = vld [vmem:[#allocation2 + $0x8] sm:$0xff]
    %v193 = vld [vmem:[#allocation2 + $0x10] sm:$0xff]
    %v194 = vld [vmem:[#allocation2 + $0x18] sm:$0xff]
    %v195 = vld [vmem:[#allocation2 + $0x20] sm:$0xff]
    %v196 = vld [vmem:[#allocation2 + $0x28] sm:$0xff]
    %v197 = vld [vmem:[#allocation2 + $0x30] sm:$0xff]
    %v198 = vld [vmem:[#allocation2 + $0x38] sm:$0xff]
    %v199 = vld [vmem:[#allocation2 + $0x40] sm:$0xff]
    %v200 = vld [vmem:[#allocation2 + $0x48] sm:$0xff]
    %v201 = vld [vmem:[#allocation2 + $0x50] sm:$0xff]
    %v202 = vld [vmem:[#allocation2 + $0x58] sm:$0xff]
    %v203 = vld [vmem:[#allocation2 + $0x60] sm:$0xff]
    %v204 = vld [vmem:[#allocation2 + $0x68] sm:$0xff]
    %v205 = vld [vmem:[#allocation2 + $0x70] sm:$0xff]
    %v206 = vld [vmem:[#allocation2 + $0x78] sm:$0xff]
    %v207 = vmul.f32 %v191, %v109
    %v208 = vmul.f32 %v192, %v113
    %v209 = vmul.f32 %v193, %v120
    %v210 = vmul.f32 %v194, %v124
    %v211 = vmul.f32 %v195, %v131
    %v212 = vmul.f32 %v196, %v135
    %v213 = vmul.f32 %v197, %v142
    %v214 = vmul.f32 %v198, %v146
    %v215 = vmul.f32 %v199, %v153
    %v216 = vmul.f32 %v200, %v157
    %v217 = vmul.f32 %v201, %v164
    %v218 = vmul.f32 %v202, %v168
    %v219 = vmul.f32 %v203, %v175
    %v220 = vmul.f32 %v204, %v179
    %v221 = vmul.f32 %v205, %v186
    %v222 = vmul.f32 %v206, %v190
    %v223 = vadd.f32 %v207, %v208
    %v224 = vrot.slane %v223, 4
    %v225 = vadd.f32 %v223, %v224
    %v226 = vrot.slane %v225, 2
    %v227 = vadd.f32 %v225, %v226
    %v228 = vrot.slane %v227, 1
    %v229 = vadd.f32 %v227, %v228
    %v230 = vadd.f32 %v209, %v210
    %v231 = vrot.slane %v230, 4
    %v232 = vadd.f32 %v230, %v231
    %v233 = vrot.slane %v232, 2
    %v234 = vadd.f32 %v232, %v233
    %v235 = vrot.slane %v234, 1
    %v236 = vadd.f32 %v234, %v235
    %v237 = vadd.f32 %v211, %v212
    %v238 = vrot.slane %v237, 4
    %v239 = vadd.f32 %v237, %v238
    %v240 = vrot.slane %v239, 2
    %v241 = vadd.f32 %v239, %v240
    %v242 = vrot.slane %v241, 1
    %v243 = vadd.f32 %v241, %v242
    %v244 = vadd.f32 %v213, %v214
    %v245 = vrot.slane %v244, 4
    %v246 = vadd.f32 %v244, %v245
    %v247 = vrot.slane %v246, 2
    %v248 = vadd.f32 %v246, %v247
    %v249 = vrot.slane %v248, 1
    %v250 = vadd.f32 %v248, %v249
    %v251 = vadd.f32 %v215, %v216
    %v252 = vrot.slane %v251, 4
    %v253 = vadd.f32 %v251, %v252
    %v254 = vrot.slane %v253, 2
    %v255 = vadd.f32 %v253, %v254
    %v256 = vrot.slane %v255, 1
    %v257 = vadd.f32 %v255, %v256
    %v258 = vadd.f32 %v217, %v218
    %v259 = vrot.slane %v258, 4
    %v260 = vadd.f32 %v258, %v259
    %v261 = vrot.slane %v260, 2
    %v262 = vadd.f32 %v260, %v261
    %v263 = vrot.slane %v262, 1
    %v264 = vadd.f32 %v262, %v263
    %v265 = vadd.f32 %v219, %v220
    %v266 = vrot.slane %v265, 4
    %v267 = vadd.f32 %v265, %v266
    %v268 = vrot.slane %v267, 2
    %v269 = vadd.f32 %v267, %v268
    %v270 = vrot.slane %v269, 1
    %v271 = vadd.f32 %v269, %v270
    %v272 = vadd.f32 %v221, %v222
    %v273 = vrot.slane %v272, 4
    %v274 = vadd.f32 %v272, %v273
    %v275 = vrot.slane %v274, 2
    %v276 = vadd.f32 %v274, %v275
    %v277 = vrot.slane %v276, 1
    %v278 = vadd.f32 %v276, %v277
    %vm279 = vcmask 130048
    %v280 = vsel %vm279, %v102, 0.0
    %281 = vadd.xlane.f32.xlu0 %v280
    %v282 = vpop.xlane.xlu0 %281
    %v283 = vld [vmem:[#allocation7] sm:$0xff]
    %v284 = vld [vmem:[#allocation7 + $0x8] sm:$0xff]
    %v285 = vld [vmem:[#allocation7 + $0x10] sm:$0xff]
    %v286 = vld [vmem:[#allocation7 + $0x18] sm:$0xff]
    %v287 = vld [vmem:[#allocation7 + $0x20] sm:$0xff]
    %v288 = vld [vmem:[#allocation7 + $0x28] sm:$0xff]
    %v289 = vld [vmem:[#allocation7 + $0x30] sm:$0xff]
    %v290 = vld [vmem:[#allocation7 + $0x38] sm:$0xff]
    %v291 = vld [vmem:[#allocation7 + $0x40] sm:$0xff]
    %v292 = vld [vmem:[#allocation7 + $0x48] sm:$0xff]
    %v293 = vld [vmem:[#allocation7 + $0x50] sm:$0xff]
    %v294 = vld [vmem:[#allocation7 + $0x58] sm:$0xff]
    %v295 = vld [vmem:[#allocation7 + $0x60] sm:$0xff]
    %v296 = vld [vmem:[#allocation7 + $0x68] sm:$0xff]
    %v297 = vld [vmem:[#allocation7 + $0x70] sm:$0xff]
    %v298 = vld [vmem:[#allocation7 + $0x78] sm:$0xff]
    %v299 = vld [vmem:[%s3] sm:$0x1]
    %v301 = vlaneseq
    %v302 = vshrl.u32 %v301, 7
    %v303 = vsub.s32 0, %v302
    %v304 = vrot.slane %v299, %v303
    %v306 = vmul.f32 %v282, %v304
    %vm315 = vcmask 1041409
    %v316 = vsel %vm315, %v236, %v229
    %vm317 = vcmask 1042434
    %v318 = vsel %vm317, %v243, %v316
    %vm319 = vcmask 1043459
    %v320 = vsel %vm319, %v250, %v318
    %vm321 = vcmask 1044484
    %v322 = vsel %vm321, %v257, %v320
    %vm323 = vcmask 1045509
    %v324 = vsel %vm323, %v264, %v322
    %vm325 = vcmask 1046534
    %v326 = vsel %vm325, %v271, %v324
    %vm327 = vcmask 1047559
    %v328 = vsel %vm327, %v278, %v326
    %330 = vmatprep.subr.mxu0 0.0
    %331 = vmatpush1.msra.mxu0 %v283
    %332 = vmatprep.subr.mxu0 0.0
    %333 = vmatpush1.msra.mxu0 %v284
    %334 = vmatprep.subr.mxu0 0.0
    %335 = vmatpush1.msra.mxu0 %v285
    %336 = vmatprep.subr.mxu0 0.0
    %337 = vmatpush1.msra.mxu0 %v286
    %338 = vmatprep.subr.mxu0 0.0
    %339 = vmatpush1.msra.mxu0 %v287
    %340 = vmatprep.subr.mxu0 0.0
    %341 = vmatpush1.msra.mxu0 %v288
    %342 = vmatprep.subr.mxu0 0.0
    %343 = vmatpush1.msra.mxu0 %v289
    %344 = vmatprep.subr.mxu0 0.0
    %345 = vmatpush1.msra.mxu0 %v290
    %346 = vmatprep.subr.mxu0 0.0
    %347 = vmatpush1.msra.mxu0 %v291
    %348 = vmatprep.subr.mxu0 0.0
    %349 = vmatpush1.msra.mxu0 %v292
    %350 = vmatprep.subr.mxu0 0.0
    %351 = vmatpush1.msra.mxu0 %v293
    %352 = vmatprep.subr.mxu0 0.0
    %353 = vmatpush1.msra.mxu0 %v294
    %354 = vmatprep.subr.mxu0 0.0
    %355 = vmatpush1.msra.mxu0 %v295
    %356 = vmatprep.subr.mxu0 0.0
    %357 = vmatpush1.msra.mxu0 %v296
    %358 = vmatprep.subr.mxu0 0.0
    %359 = vmatpush1.msra.mxu0 %v297
    %360 = vmatprep.subr.mxu0 0.0
    %361 = vmatpush1.msra.mxu0 %v298
    %362 = vmatprep.subr.mxu0 0.0
    %363 = vmatpush1.msra.mxu0 0.0
    %364 = vmatprep.subr.mxu0 0.0
    %365 = vmatpush1.msra.mxu0 0.0
    %366 = vmatprep.subr.mxu0 0.0
    %367 = vmatpush1.msra.mxu0 0.0
    %368 = vmatprep.subr.mxu0 0.0
    %369 = vmatpush1.msra.mxu0 0.0
    %370 = vmatprep.subr.mxu0 0.0
    %371 = vmatpush1.msra.mxu0 0.0
    %372 = vmatprep.subr.mxu0 0.0
    %373 = vmatpush1.msra.mxu0 0.0
    %374 = vmatprep.subr.mxu0 0.0
    %375 = vmatpush1.msra.mxu0 0.0
    %376 = vmatprep.subr.mxu0 0.0
    %377 = vmatpush1.msra.mxu0 0.0
    %378 = vmatprep.subr.mxu0 0.0
    %379 = vmatpush1.msra.mxu0 0.0
    %380 = vmatprep.subr.mxu0 0.0
    %381 = vmatpush1.msra.mxu0 0.0
    %382 = vmatprep.subr.mxu0 0.0
    %383 = vmatpush1.msra.mxu0 0.0
    %384 = vmatprep.subr.mxu0 0.0
    %385 = vmatpush1.msra.mxu0 0.0
    %386 = vmatprep.subr.mxu0 0.0
    %387 = vmatpush1.msra.mxu0 0.0
    %388 = vmatprep.subr.mxu0 0.0
    %389 = vmatpush1.msra.mxu0 0.0
    %390 = vmatprep.subr.mxu0 0.0
    %391 = vmatpush1.msra.mxu0 0.0
    %392 = vmatprep.subr.mxu0 0.0
    %393 = vmatpush1.msra.mxu0 0.0
    %394 = vmatprep.mubr.f32.mxu0 0.0
    %395 = vmatmul.mubr.f32.gmra.mrb[0].mxu0 %v328
    %v396 = vpop.f32.mrb[0].mxu0
    %v397 = vadd.f32 %v306, %v396
    %v398 = vpop.f32.mrb[0].mxu0
    %399 = vdwg.mxu0
    %v400 = vsub.f32 1.0, %v282
    %v401 = vld [vmem:[%s4] sm:$0x1]
    %v403 = vlaneseq
    %v404 = vshrl.u32 %v403, 7
    %v405 = vsub.s32 0, %v404
    %v406 = vrot.slane %v401, %v405
    %v408 = vmul.f32 %v400, %v406
    %v409 = vadd.f32 %v397, %v408
    %410 = vst [vmem:[#allocation11] sm:$0xff] %v409
    %v411 = vld [vmem:[#allocation8] sm:$0xff]
    %v412 = vld [vmem:[#allocation8 + $0x8] sm:$0xff]
    %v413 = vld [vmem:[#allocation8 + $0x10] sm:$0xff]
    %v414 = vld [vmem:[#allocation8 + $0x18] sm:$0xff]
    %v415 = vld [vmem:[#allocation8 + $0x20] sm:$0xff]
    %v416 = vld [vmem:[#allocation8 + $0x28] sm:$0xff]
    %v417 = vld [vmem:[#allocation8 + $0x30] sm:$0xff]
    %v418 = vld [vmem:[#allocation8 + $0x38] sm:$0xff]
    %v419 = vld [vmem:[#allocation8 + $0x40] sm:$0xff]
    %v420 = vld [vmem:[#allocation8 + $0x48] sm:$0xff]
    %v421 = vld [vmem:[#allocation8 + $0x50] sm:$0xff]
    %v422 = vld [vmem:[#allocation8 + $0x58] sm:$0xff]
    %v423 = vld [vmem:[#allocation8 + $0x60] sm:$0xff]
    %v424 = vld [vmem:[#allocation8 + $0x68] sm:$0xff]
    %v425 = vld [vmem:[#allocation8 + $0x70] sm:$0xff]
    %v426 = vld [vmem:[#allocation8 + $0x78] sm:$0xff]
    %v427 = vld [vmem:[%s6] sm:$0x1]
    %v429 = vlaneseq
    %v430 = vshrl.u32 %v429, 7
    %v431 = vsub.s32 0, %v430
    %v432 = vrot.slane %v427, %v431
    %434 = vmatprep.subr.mxu0 0.0
    %435 = vmatpush1.msra.mxu0 %v411
    %436 = vmatprep.subr.mxu0 0.0
    %437 = vmatpush1.msra.mxu0 %v412
    %438 = vmatprep.subr.mxu0 0.0
    %439 = vmatpush1.msra.mxu0 %v413
    %440 = vmatprep.subr.mxu0 0.0
    %441 = vmatpush1.msra.mxu0 %v414
    %442 = vmatprep.subr.mxu0 0.0
    %443 = vmatpush1.msra.mxu0 %v415
    %444 = vmatprep.subr.mxu0 0.0
    %445 = vmatpush1.msra.mxu0 %v416
    %446 = vmatprep.subr.mxu0 0.0
    %447 = vmatpush1.msra.mxu0 %v417
    %448 = vmatprep.subr.mxu0 0.0
    %449 = vmatpush1.msra.mxu0 %v418
    %450 = vmatprep.subr.mxu0 0.0
    %451 = vmatpush1.msra.mxu0 %v419
    %452 = vmatprep.subr.mxu0 0.0
    %453 = vmatpush1.msra.mxu0 %v420
    %454 = vmatprep.subr.mxu0 0.0
    %455 = vmatpush1.msra.mxu0 %v421
    %456 = vmatprep.subr.mxu0 0.0
    %457 = vmatpush1.msra.mxu0 %v422
    %458 = vmatprep.subr.mxu0 0.0
    %459 = vmatpush1.msra.mxu0 %v423
    %460 = vmatprep.subr.mxu0 0.0
    %461 = vmatpush1.msra.mxu0 %v424
    %462 = vmatprep.subr.mxu0 0.0
    %463 = vmatpush1.msra.mxu0 %v425
    %464 = vmatprep.subr.mxu0 0.0
    %465 = vmatpush1.msra.mxu0 %v426
    %466 = vmatprep.subr.mxu0 0.0
    %467 = vmatpush1.msra.mxu0 0.0
    %468 = vmatprep.subr.mxu0 0.0
    %469 = vmatpush1.msra.mxu0 0.0
    %470 = vmatprep.subr.mxu0 0.0
    %471 = vmatpush1.msra.mxu0 0.0
    %472 = vmatprep.subr.mxu0 0.0
    %473 = vmatpush1.msra.mxu0 0.0
    %474 = vmatprep.subr.mxu0 0.0
    %475 = vmatpush1.msra.mxu0 0.0
    %476 = vmatprep.subr.mxu0 0.0
    %477 = vmatpush1.msra.mxu0 0.0
    %478 = vmatprep.subr.mxu0 0.0
    %479 = vmatpush1.msra.mxu0 0.0
    %480 = vmatprep.subr.mxu0 0.0
    %481 = vmatpush1.msra.mxu0 0.0
    %482 = vmatprep.subr.mxu0 0.0
    %483 = vmatpush1.msra.mxu0 0.0
    %484 = vmatprep.subr.mxu0 0.0
    %485 = vmatpush1.msra.mxu0 0.0
    %486 = vmatprep.subr.mxu0 0.0
    %487 = vmatpush1.msra.mxu0 0.0
    %488 = vmatprep.subr.mxu0 0.0
    %489 = vmatpush1.msra.mxu0 0.0
    %490 = vmatprep.subr.mxu0 0.0
    %491 = vmatpush1.msra.mxu0 0.0
    %492 = vmatprep.subr.mxu0 0.0
    %493 = vmatpush1.msra.mxu0 0.0
    %494 = vmatprep.subr.mxu0 0.0
    %495 = vmatpush1.msra.mxu0 0.0
    %496 = vmatprep.subr.mxu0 0.0
    %497 = vmatpush1.msra.mxu0 0.0
    %498 = vmatprep.mubr.f32.mxu0 0.0
    %499 = vmatmul.mubr.f32.gmra.mrb[0].mxu0 %v409
    %v500 = vpop.f32.mrb[0].mxu0
    %v501 = vadd.f32 %v432, %v500
    %v502 = vpop.f32.mrb[0].mxu0
    %503 = vdwg.mxu0
    %v504 = vmul.f32 %v501, %v501
    %v505 = vmul.f32 %v501, %v504
    %v506 = vmul.f32 %v505, 0.044715
    %v507 = vadd.f32 %v501, %v506
    %v508 = vmul.f32 %v507, 0.7978846
    %v509 = vtanh.pop %v508
    %v510 = vadd.f32 %v509, 1.0
    %v511 = vmul.f32 %v510, 0.5
    %v512 = vmul.f32 %v501, %v511
    %v513 = vld [vmem:[#allocation10] sm:$0xff]
    %v514 = vld [vmem:[#allocation10 + $0x8] sm:$0xff]
    %v515 = vld [vmem:[#allocation10 + $0x10] sm:$0xff]
    %v516 = vld [vmem:[#allocation10 + $0x18] sm:$0xff]
    %v517 = vld [vmem:[#allocation10 + $0x20] sm:$0xff]
    %v518 = vld [vmem:[#allocation10 + $0x28] sm:$0xff]
    %v519 = vld [vmem:[#allocation10 + $0x30] sm:$0xff]
    %v520 = vld [vmem:[#allocation10 + $0x38] sm:$0xff]
    %v521 = vld [vmem:[#allocation10 + $0x40] sm:$0xff]
    %v522 = vld [vmem:[#allocation10 + $0x48] sm:$0xff]
    %v523 = vld [vmem:[#allocation10 + $0x50] sm:$0xff]
    %v524 = vld [vmem:[#allocation10 + $0x58] sm:$0xff]
    %v525 = vld [vmem:[#allocation10 + $0x60] sm:$0xff]
    %v526 = vld [vmem:[#allocation10 + $0x68] sm:$0xff]
    %v527 = vld [vmem:[#allocation10 + $0x70] sm:$0xff]
    %v528 = vld [vmem:[#allocation10 + $0x78] sm:$0xff]
    %v529 = vld [vmem:[%s8] sm:$0x1]
    %v531 = vlaneseq
    %v532 = vshrl.u32 %v531, 7
    %v533 = vsub.s32 0, %v532
    %v534 = vrot.slane %v529, %v533
    %536 = vmatprep.subr.mxu0 0.0
    %537 = vmatpush1.msra.mxu0 %v513
    %538 = vmatprep.subr.mxu0 0.0
    %539 = vmatpush1.msra.mxu0 %v514
    %540 = vmatprep.subr.mxu0 0.0
    %541 = vmatpush1.msra.mxu0 %v515
    %542 = vmatprep.subr.mxu0 0.0
    %543 = vmatpush1.msra.mxu0 %v516
    %544 = vmatprep.subr.mxu0 0.0
    %545 = vmatpush1.msra.mxu0 %v517
    %546 = vmatprep.subr.mxu0 0.0
    %547 = vmatpush1.msra.mxu0 %v518
    %548 = vmatprep.subr.mxu0 0.0
    %549 = vmatpush1.msra.mxu0 %v519
    %550 = vmatprep.subr.mxu0 0.0
    %551 = vmatpush1.msra.mxu0 %v520
    %552 = vmatprep.subr.mxu0 0.0
    %553 = vmatpush1.msra.mxu0 %v521
    %554 = vmatprep.subr.mxu0 0.0
    %555 = vmatpush1.msra.mxu0 %v522
    %556 = vmatprep.subr.mxu0 0.0
    %557 = vmatpush1.msra.mxu0 %v523
    %558 = vmatprep.subr.mxu0 0.0
    %559 = vmatpush1.msra.mxu0 %v524
    %560 = vmatprep.subr.mxu0 0.0
    %561 = vmatpush1.msra.mxu0 %v525
    %562 = vmatprep.subr.mxu0 0.0
    %563 = vmatpush1.msra.mxu0 %v526
    %564 = vmatprep.subr.mxu0 0.0
    %565 = vmatpush1.msra.mxu0 %v527
    %566 = vmatprep.subr.mxu0 0.0
    %567 = vmatpush1.msra.mxu0 %v528
    %568 = vmatprep.subr.mxu0 0.0
    %569 = vmatpush1.msra.mxu0 0.0
    %570 = vmatprep.subr.mxu0 0.0
    %571 = vmatpush1.msra.mxu0 0.0
    %572 = vmatprep.subr.mxu0 0.0
    %573 = vmatpush1.msra.mxu0 0.0
    %574 = vmatprep.subr.mxu0 0.0
    %575 = vmatpush1.msra.mxu0 0.0
    %576 = vmatprep.subr.mxu0 0.0
    %577 = vmatpush1.msra.mxu0 0.0
    %578 = vmatprep.subr.mxu0 0.0
    %579 = vmatpush1.msra.mxu0 0.0
    %580 = vmatprep.subr.mxu0 0.0
    %581 = vmatpush1.msra.mxu0 0.0
    %582 = vmatprep.subr.mxu0 0.0
    %583 = vmatpush1.msra.mxu0 0.0
    %584 = vmatprep.subr.mxu0 0.0
    %585 = vmatpush1.msra.mxu0 0.0
    %586 = vmatprep.subr.mxu0 0.0
    %587 = vmatpush1.msra.mxu0 0.0
    %588 = vmatprep.subr.mxu0 0.0
    %589 = vmatpush1.msra.mxu0 0.0
    %590 = vmatprep.subr.mxu0 0.0
    %591 = vmatpush1.msra.mxu0 0.0
    %592 = vmatprep.subr.mxu0 0.0
    %593 = vmatpush1.msra.mxu0 0.0
    %594 = vmatprep.subr.mxu0 0.0
    %595 = vmatpush1.msra.mxu0 0.0
    %596 = vmatprep.subr.mxu0 0.0
    %597 = vmatpush1.msra.mxu0 0.0
    %598 = vmatprep.subr.mxu0 0.0
    %599 = vmatpush1.msra.mxu0 0.0
    %600 = vmatprep.mubr.f32.mxu0 0.0
    %601 = vmatmul.mubr.f32.gmra.mrb[0].mxu0 %v512
    %v602 = vpop.f32.mrb[0].mxu0
    %v603 = vadd.f32 %v534, %v602
    %v604 = vpop.f32.mrb[0].mxu0
    %605 = vdwg.mxu0
    %606 = vst [vmem:[#allocation12] sm:$0xff] %v603
    // Predicated region
    $region58: #{tpu_custom_call.1} parent=1 // pred_check
      _
    $region59: #{tpu_custom_call.1} parent=1 // pred_check_branch
      %608 = sbr.rel (0) target = $region61
    $region60: #{tpu_custom_call.1} parent=1 // pred_region
      %s610 = ssub.s32 128, 128
      %611 = vsyncadd [#allocation4], %s610
      %s613 = sshll.u32 [#allocation11], 4
      %s614 = int_to_ptr.vmem [resolvable:$true] %s613
      %616 = dma.vmem_to_hbm [thread:$0]  %s614, 128, %s9, [#allocation4]
    $region61: #{tpu_custom_call.1} parent=1 // pred_fallthru
      _
    // Predicated region
    $region62: #{tpu_custom_call.1} parent=1 // pred_check
      _
    $region63: #{tpu_custom_call.1} parent=1 // pred_check_branch
      %618 = sbr.rel (0) target = $region65
    $region64: #{tpu_custom_call.1} parent=1 // pred_region
      %s620 = ssub.s32 128, 128
      %621 = vsyncadd [#allocation13], %s620
      %s623 = sshll.u32 [#allocation12], 4
      %s624 = int_to_ptr.vmem [resolvable:$true] %s623
      %626 = dma.vmem_to_hbm [thread:$0]  %s624, 128, %s10, [#allocation13]
    $region65: #{tpu_custom_call.1} parent=1 // pred_fallthru
      _
    // Predicated region
    $region66: #{tpu_custom_call.1} parent=1 // pred_check
      _
    $region67: #{tpu_custom_call.1} parent=1 // pred_check_branch
      %628 = sbr.rel (0) target = $region69
    $region68: #{tpu_custom_call.1} parent=1 // pred_region
      %629 = dma.done [#allocation4], 128
    $region69: #{tpu_custom_call.1} parent=1 // pred_fallthru
      _
    // Predicated region
    $region70: #{tpu_custom_call.1} parent=1 // pred_check
      _
    $region71: #{tpu_custom_call.1} parent=1 // pred_check_branch
      %631 = sbr.rel (0) target = $region73
    $region72: #{tpu_custom_call.1} parent=1 // pred_region
      %632 = dma.done [#allocation13], 128
    $region73: #{tpu_custom_call.1} parent=1 // pred_fallthru
      _
    %633 = vsyncpa [#allocation3], 1
    %634 = vsyncpa [#allocation6], 1
    %635 = vsyncpa [#allocation9], 1
    %636 = vsyncpa [#allocation4], 1
    %637 = vsyncpa [#allocation13], 1

</llo_original>
